<compile_context>
chip_gen: v5e
topology: v5e:2x2
jax: 0.10.0
libtpu: 0.0.40
codegen_flags: <defaults>
</compile_context>

<pallas_src>
import functools
import math

import jax
import jax.numpy as jnp
from jax import lax
from jax.experimental import pallas as pl
from jax.experimental.pallas import tpu as pltpu


def _pair(v):
    if isinstance(v, int):
        return (v, v)
    v = tuple(v)
    if len(v) == 1:
        return (v[0], v[0])
    return (v[0], v[1])


def _same_pad_amounts(size, k, s):
    """PyTorch MaxPool2dStaticSamePadding arithmetic for one spatial dim."""
    out = math.ceil(size / s)
    extra = (out - 1) * s - size + k
    lo = extra // 2
    hi = extra - lo
    return out, extra, lo, hi


def _pick_channel_tile(C, per_channel_bytes, budget=6 * 1024 * 1024):
    # Mosaic tiling rule: the lane-dim block must be a multiple of 128 or the
    # full C.  Prefer the largest lane-dense tile that fits the VMEM budget.
    fitting = [tc for tc in (1024, 512, 384, 256, 128)
               if C % tc == 0 and tc * per_channel_bytes <= budget]
    if fitting:
        return max(fitting)
    return C  # full channel dim (always a legal block)


# -----------------------------------------------------------------------------
# Kernel: zero-pad into VMEM scratch, then separable (W pass, H pass) max pool.
# -----------------------------------------------------------------------------
def _maxpool_same_kernel(x_ref, o_ref, pad_ref, row_ref, *,
                         kh, kw, sh, sw, top, left):
    H, W, _ = x_ref.shape
    Ho, Wo, _ = o_ref.shape

    # Build the zero-padded tile in VMEM (zero padding == F.pad default, so the
    # padded positions participate in the max exactly like the reference).
    pad_ref[...] = jnp.zeros_like(pad_ref)
    pad_ref[pl.ds(top, H), pl.ds(left, W), :] = x_ref[...]

    # Pass 1: pool along W.  kw strided taps on the sublane dim (vs kh*kw before).
    r = pad_ref[:, pl.ds(0, Wo, stride=sw), :]
    for j in range(1, kw):
        r = jnp.maximum(r, pad_ref[:, pl.ds(j, Wo, stride=sw), :])
    row_ref[...] = r

    # Pass 2: pool along H.  Strided taps on the leading (non-tiled) dim: cheap.
    o = row_ref[pl.ds(0, Ho, stride=sh), :, :]
    for i in range(1, kh):
        o = jnp.maximum(o, row_ref[pl.ds(i, Ho, stride=sh), :, :])
    o_ref[...] = o


# -----------------------------------------------------------------------------
# NHWC wrapper (TPU-native layout).
# -----------------------------------------------------------------------------
def maxpool2d_static_same(x, kernel_size=3, stride=None):
    kh, kw = _pair(kernel_size)
    if stride is None:          # nn.MaxPool2d default: stride = kernel_size
        sh, sw = kh, kw
    else:
        sh, sw = _pair(stride)

    N, H, W, C = x.shape
    Ho, extra_v, top, _ = _same_pad_amounts(H, kh, sh)
    Wo, extra_h, left, _ = _same_pad_amounts(W, kw, sw)
    # Negative "extra" (kernel < stride) would mean F.pad cropping; not supported.
    assert extra_v >= 0 and extra_h >= 0, "kernel_size must be >= stride"
    Hp, Wp = H + extra_v, W + extra_h

    itemsize = jnp.dtype(x.dtype).itemsize
    per_c = itemsize * (2 * H * W + Hp * Wp + Hp * Wo + 2 * Ho * Wo)
    TC = _pick_channel_tile(C, per_c)

    kernel = functools.partial(_maxpool_same_kernel,
                               kh=kh, kw=kw, sh=sh, sw=sw, top=top, left=left)

    return pl.pallas_call(
        kernel,
        out_shape=jax.ShapeDtypeStruct((N, Ho, Wo, C), x.dtype),
        grid=(N, C // TC),
        in_specs=[pl.BlockSpec((None, H, W, TC), lambda n, c: (n, 0, 0, c))],
        out_specs=pl.BlockSpec((None, Ho, Wo, TC), lambda n, c: (n, 0, 0, c)),
        scratch_shapes=[
            pltpu.VMEM((Hp, Wp, TC), x.dtype),   # zero-padded input tile
            pltpu.VMEM((Hp, Wo, TC), x.dtype),   # W-pooled rows
        ],
        compiler_params=pltpu.CompilerParams(
            dimension_semantics=("parallel", "parallel")),
    )(x)


# -----------------------------------------------------------------------------
# NCHW wrapper mirroring the PyTorch module interface.
# -----------------------------------------------------------------------------
def maxpool2d_static_same_nchw(x, kernel_size=3, stride=None):
    y = maxpool2d_static_same(jnp.transpose(x, (0, 2, 3, 1)), kernel_size, stride)
    return jnp.transpose(y, (0, 3, 1, 2))


# -----------------------------------------------------------------------------
# Pure-JAX reference (zero-pad + reduce_window max), NCHW like the PyTorch module.
# -----------------------------------------------------------------------------
def _reference_nchw(x, kernel_size=3, stride=None):
    kh, kw = _pair(kernel_size)
    if stride is None:
        sh, sw = kh, kw
    else:
        sh, sw = _pair(stride)
    N, C, H, W = x.shape
    _, _, top, bottom = _same_pad_amounts(H, kh, sh)
    _, _, left, right = _same_pad_amounts(W, kw, sw)
    xp = jnp.pad(x, ((0, 0), (0, 0), (top, bottom), (left, right)))
    return lax.reduce_window(xp, jnp.array(-jnp.inf, x.dtype), lax.max,
                             (1, 1, kh, kw), (1, 1, sh, sw), "VALID")


if __name__ == "__main__":
    key = jax.random.PRNGKey(0)
    k1, k2, k3 = jax.random.split(key, 3)

    cases = [
        ((2, 128, 15, 15), jnp.float32, k1),   # odd spatial -> symmetric 1/1 pad
        ((2, 64, 16, 16), jnp.float32, k2),    # even spatial -> 0/1 pad
        ((1, 96, 9, 13), jnp.bfloat16, k3),    # ragged spatial + bf16 storage
    ]

    fwd = jax.jit(functools.partial(maxpool2d_static_same_nchw,
                                    kernel_size=3, stride=2))

    for shape, dtype, k in cases:
        x = jax.random.normal(k, shape, dtype)
        y = jax.block_until_ready(fwd(x))
        ref = _reference_nchw(x, kernel_size=3, stride=2)
        assert y.shape == ref.shape, (y.shape, ref.shape)
        assert bool(jnp.all(y == ref)), f"mismatch for {shape} {dtype}"
        assert bool(jnp.all(jnp.isfinite(y.astype(jnp.float32))))

    print("KERNEL_OK")
</pallas_src>

<mosaic_0001>
module attributes {stable_mosaic.version = 11 : i64} {
  func.func @_maxpool_same_kernel(%arg0: i32, %arg1: i32, %arg2: memref<1x15x15x128xf32, #tpu.memory_space<vmem>>, %arg3: memref<1x8x8x128xf32, #tpu.memory_space<vmem>>, %arg4: memref<17x17x128xf32, #tpu.memory_space<vmem>>, %arg5: memref<17x8x128xf32, #tpu.memory_space<vmem>>) attributes {dimension_semantics = [#tpu.dimension_semantics<parallel>, #tpu.dimension_semantics<parallel>], iteration_bounds = array<i64: 2, 1>, scalar_prefetch = 0 : i64, scratch_operands = 2 : i64, tpu.core_type = #tpu.core_type<tc>, window_params = [{transform_indices = @transform_0, window_bounds = array<i64: 1, 15, 15, 128>}, {transform_indices = @transform_1, window_bounds = array<i64: 1, 8, 8, 128>}]} {
    %cst = arith.constant 0.000000e+00 : f32
    %0 = vector.broadcast %cst : f32 to vector<17x17x128xf32>
    %c0 = arith.constant 0 : index
    %c0_0 = arith.constant 0 : index
    %c0_1 = arith.constant 0 : index
    %1 = vector.load %arg4[%c0, %c0_0, %c0_1] : memref<17x17x128xf32, #tpu.memory_space<vmem>>, vector<17x17x128xf32>
    tpu.vector_store %arg4[%c0, %c0_0, %c0_1], %0 {strides = array<i32>} : memref<17x17x128xf32, #tpu.memory_space<vmem>>, vector<17x17x128xf32>,
    %c0_2 = arith.constant 0 : index
    %c0_3 = arith.constant 0 : index
    %c0_4 = arith.constant 0 : index
    %c0_5 = arith.constant 0 : index
    %2 = vector.load %arg2[%c0_2, %c0_3, %c0_4, %c0_5] : memref<1x15x15x128xf32, #tpu.memory_space<vmem>>, vector<1x15x15x128xf32>
    %3 = vector.shape_cast %2 : vector<1x15x15x128xf32> to vector<15x15x128xf32>
    %c1 = arith.constant 1 : index
    %c1_6 = arith.constant 1 : index
    %c0_7 = arith.constant 0 : index
    %4 = vector.load %arg4[%c1, %c1_6, %c0_7] : memref<17x17x128xf32, #tpu.memory_space<vmem>>, vector<15x15x128xf32>
    tpu.vector_store %arg4[%c1, %c1_6, %c0_7], %3 {strides = array<i32>} : memref<17x17x128xf32, #tpu.memory_space<vmem>>, vector<15x15x128xf32>,
    %c0_8 = arith.constant 0 : index
    %c0_9 = arith.constant 0 : index
    %c0_10 = arith.constant 0 : index
    %5 = tpu.strided_load %arg4[%c0_8, %c0_9, %c0_10] {strides = array<i32: 1, 2, 1>} : memref<17x17x128xf32, #tpu.memory_space<vmem>>, vector<17x8x128xf32>
    %c0_11 = arith.constant 0 : index
    %c1_12 = arith.constant 1 : index
    %c0_13 = arith.constant 0 : index
    %6 = tpu.strided_load %arg4[%c0_11, %c1_12, %c0_13] {strides = array<i32: 1, 2, 1>} : memref<17x17x128xf32, #tpu.memory_space<vmem>>, vector<17x8x128xf32>
    %7 = arith.maximumf %5, %6 : vector<17x8x128xf32>
    %c0_14 = arith.constant 0 : index
    %c2 = arith.constant 2 : index
    %c0_15 = arith.constant 0 : index
    %8 = tpu.strided_load %arg4[%c0_14, %c2, %c0_15] {strides = array<i32: 1, 2, 1>} : memref<17x17x128xf32, #tpu.memory_space<vmem>>, vector<17x8x128xf32>
    %9 = arith.maximumf %7, %8 : vector<17x8x128xf32>
    %c0_16 = arith.constant 0 : index
    %c0_17 = arith.constant 0 : index
    %c0_18 = arith.constant 0 : index
    %10 = vector.load %arg5[%c0_16, %c0_17, %c0_18] : memref<17x8x128xf32, #tpu.memory_space<vmem>>, vector<17x8x128xf32>
    tpu.vector_store %arg5[%c0_16, %c0_17, %c0_18], %9 {strides = array<i32>} : memref<17x8x128xf32, #tpu.memory_space<vmem>>, vector<17x8x128xf32>,
    %c0_19 = arith.constant 0 : index
    %c0_20 = arith.constant 0 : index
    %c0_21 = arith.constant 0 : index
    %11 = tpu.strided_load %arg5[%c0_19, %c0_20, %c0_21] {strides = array<i32: 2, 1, 1>} : memref<17x8x128xf32, #tpu.memory_space<vmem>>, vector<8x8x128xf32>
    %c1_22 = arith.constant 1 : index
    %c0_23 = arith.constant 0 : index
    %c0_24 = arith.constant 0 : index
    %12 = tpu.strided_load %arg5[%c1_22, %c0_23, %c0_24] {strides = array<i32: 2, 1, 1>} : memref<17x8x128xf32, #tpu.memory_space<vmem>>, vector<8x8x128xf32>
    %13 = arith.maximumf %11, %12 : vector<8x8x128xf32>
    %c2_25 = arith.constant 2 : index
    %c0_26 = arith.constant 0 : index
    %c0_27 = arith.constant 0 : index
    %14 = tpu.strided_load %arg5[%c2_25, %c0_26, %c0_27] {strides = array<i32: 2, 1, 1>} : memref<17x8x128xf32, #tpu.memory_space<vmem>>, vector<8x8x128xf32>
    %15 = arith.maximumf %13, %14 : vector<8x8x128xf32>
    %c0_28 = arith.constant 0 : index
    %c0_29 = arith.constant 0 : index
    %c0_30 = arith.constant 0 : index
    %c0_31 = arith.constant 0 : index
    %16 = vector.load %arg3[%c0_28, %c0_29, %c0_30, %c0_31] : memref<1x8x8x128xf32, #tpu.memory_space<vmem>>, vector<1x8x8x128xf32>
    %17 = vector.shape_cast %16 : vector<1x8x8x128xf32> to vector<8x8x128xf32>
    %18 = vector.shape_cast %15 : vector<8x8x128xf32> to vector<1x8x8x128xf32>
    tpu.vector_store %arg3[%c0_28, %c0_29, %c0_30, %c0_31], %18 {strides = array<i32>} : memref<1x8x8x128xf32, #tpu.memory_space<vmem>>, vector<1x8x8x128xf32>,
    return
  }
  func.func @transform_0(%arg0: i32, %arg1: i32) -> (i32, i32, i32, i32) {
    %c0_i32 = arith.constant 0 : i32
    %c0_i32_0 = arith.constant 0 : i32
    %c0_i32_1 = arith.constant 0 : i32
    return %arg0, %c0_i32, %c0_i32_0, %arg1 : i32, i32, i32, i32
  }
  func.func @transform_1(%arg0: i32, %arg1: i32) -> (i32, i32, i32, i32) {
    %c0_i32 = arith.constant 0 : i32
    %c0_i32_0 = arith.constant 0 : i32
    %c0_i32_1 = arith.constant 0 : i32
    return %arg0, %c0_i32, %c0_i32_0, %arg1 : i32, i32, i32, i32
  }
}

</mosaic_0001>

<llo_original>
// kernel: maxpool2d_static_same_nchw.1
$region0: #{maxpool2d_static_same_nchw.1}
  #allocation0 [shape = 'u32[]', space=smem, size = 0x4, offset = 0x4, fixed_abs, tag = 'smem constant byte address 0x4 - core index']
  #allocation1 [shape = 'u32[72,128]{1,0:T(1,128)}', space=vmem, size = 0x9000, scoped, tag = 'internal scratch']
  #allocation2 [shape = 'f32[17,17,128]{2,1,0:T(8,128)}', space=vmem, size = 0x33000, scoped, tag = 'scratch operand']
  #allocation3 [shape = 'f32[17,8,128]{2,1,0:T(8,128)}', space=vmem, size = 0x11000, scoped, tag = 'scratch operand']
  %s0 = inlined_call_operand.vmem [shape: f32[2,15,15,128], index: 0, kind: input, shape index: {}]
  %s1 = inlined_call_operand.hbm [shape: f32[2,8,8,128], index: 1, kind: output, shape index: {}]
  %s2 = sld [smem:[#allocation0]]
  $region37: #{maxpool2d_static_same_nchw.1} parent=0
    _
  %s4 = ssub.s32 1, %s2
  %s5 = scalar_select 0, %s4, %s2
  $region1: #{maxpool2d_static_same_nchw.1} parent=0
    #allocation4 [shape = 'u8[65536]{0}', space=vmem, size = 0x10000, scoped, tag = 'output window, operand 0']
    #allocation5 [shape = 's32[2]{0}', space=sflag, size = 0x8, scoped, tag = 'scoped memory for maxpool2d_static_same_nchw.1']
    %6 = vsyncpa [#allocation5], 0
    %s7 = scalar_lea.sflag [#allocation5], 1
    %8 = vsyncpa %s7, 0
    loop: start=0, step=1, limit=4
    $region2: #{maxpool2d_static_same_nchw.1} parent=1 // loop_pre_header
      _
    $region3: #{maxpool2d_static_same_nchw.1} parent=1 // loop_header
      %s10 = sphi 0, %s14
      %p11 = scmp.ge.s32.totalorder %s10, 4
      %s17 = sphi 0, %s29
      %s18 = sphi 0, %s25
      %s19 = sphi 0, %s17
      %s20 = sphi 0, %s18
      %s21 = sphi 0, %s19
      %s22 = sphi 0, %s20
      %s34 = sphi 0, %s36
      %s37 = sphi 0, %s34
      %s38 = sphi 0, %s37
      %s54 = sphi 0, %s38
      %s62 = sphi 0, %s64
      %s65 = sphi 0, %s62
      %s66 = sphi 0, %s65
      %s82 = sphi 0, %s66
    $region4: #{maxpool2d_static_same_nchw.1} parent=1 // loop_header_branch
      %13 = sbr.rel (%p11) target = $region8
    $region5: #{maxpool2d_static_same_nchw.1} parent=1 // loop_body
      %s15 = ssub.s32 %s10, 1
      %s16 = ssub.s32 %s10, 2
      %s23 = sadd.s32 1, %s18
      %p24 = scmp.ge.s32.totalorder %s23, 1
      %s25 = scalar_select %p24, 0, %s23
      %s26 = sadd.s32 1, %s17
      %s27 = scalar_select %p24, %s26, %s17
      %p28 = scmp.ge.s32.totalorder %s27, 2
      %s29 = scalar_select %p28, 0, %s27
      %s30 = ssub.s32 %s17, %s29
      %s31 = ssub.s32 %s18, %s25
      %s32 = sor.u32 %s30, %s31
      %p33 = scmp.eq.s32.totalorder %s32, 0
      %s35 = sadd.s32 %s34, 1
      %s36 = scalar_select %p33, %s34, %s35
      %p39 = pneg %p33
      %p40 = scmp.eq.s32.totalorder %s10, 1
      %p41 = por %p39, %p40
      %p42 = scmp.ne.s32.totalorder %s34, %s37
      %p43 = scmp.eq.s32.totalorder %s10, 0
      %p44 = por %p42, %p43
      %p45 = scmp.ne.s32.totalorder %s34, %s37
      %p46 = scmp.eq.s32.totalorder %s15, 1
      %p47 = por %p45, %p46
      %p48 = scmp.ne.s32.totalorder %s37, %s38
      %p49 = scmp.eq.s32.totalorder %s15, 0
      %p50 = por %p48, %p49
      %p51 = scmp.ne.s32.totalorder %s37, %s38
      %p52 = scmp.eq.s32.totalorder %s16, 1
      %p53 = por %p51, %p52
      %p55 = scmp.ne.s32.totalorder %s38, %s54
      %p56 = scmp.eq.s32.totalorder %s16, 0
      %p57 = por %p55, %p56
      %s58 = ssub.s32 %s17, %s29
      %s59 = ssub.s32 %s18, %s25
      %s60 = sor.u32 %s58, %s59
      %p61 = scmp.eq.s32.totalorder %s60, 0
      %s63 = sadd.s32 %s62, 1
      %s64 = scalar_select %p61, %s62, %s63
      %p67 = pneg %p61
      %p68 = scmp.eq.s32.totalorder %s10, 1
      %p69 = por %p67, %p68
      %p70 = scmp.ne.s32.totalorder %s62, %s65
      %p71 = scmp.eq.s32.totalorder %s10, 0
      %p72 = por %p70, %p71
      %p73 = scmp.ne.s32.totalorder %s62, %s65
      %p74 = scmp.eq.s32.totalorder %s15, 1
      %p75 = por %p73, %p74
      %p76 = scmp.ne.s32.totalorder %s65, %s66
      %p77 = scmp.eq.s32.totalorder %s15, 0
      %p78 = por %p76, %p77
      %p79 = scmp.ne.s32.totalorder %s65, %s66
      %p80 = scmp.eq.s32.totalorder %s16, 1
      %p81 = por %p79, %p80
      %p83 = scmp.ne.s32.totalorder %s66, %s82
      %p84 = scmp.eq.s32.totalorder %s16, 0
      %p85 = por %p83, %p84
      %p86 = scmp.le.s32.totalorder 1, %s10
      %p87 = scmp.lt.s32.totalorder %s10, 3
      %p88 = pnand %p86, %p87
      %p89 = pneg %p88
      // Predicated region
      $region9: #{maxpool2d_static_same_nchw.1} parent=5 // pred_check
        _
      $region10: #{maxpool2d_static_same_nchw.1} parent=5 // pred_check_branch
        %91 = sbr.rel (%p88) target = $region12
      $region11: #{maxpool2d_static_same_nchw.1} parent=5 // pred_region
        %s92 = ssub.s32 %s10, 1
      $region12: #{maxpool2d_static_same_nchw.1} parent=5 // pred_fallthru
        _
      %p93 = scmp.lt.s32.totalorder %s10, 2
      // Predicated region
      $region13: #{maxpool2d_static_same_nchw.1} parent=5 // pred_check
        %p94 = pneg %p93
      $region14: #{maxpool2d_static_same_nchw.1} parent=5 // pred_check_branch
        %96 = sbr.rel (%p94) target = $region16
      $region15: #{maxpool2d_static_same_nchw.1} parent=5 // pred_region
        // Predicated region
        $region17: #{maxpool2d_static_same_nchw.1} parent=15 // pred_check
          %p97 = pneg %p44
        $region18: #{maxpool2d_static_same_nchw.1} parent=15 // pred_check_branch
          %99 = sbr.rel (%p97) target = $region20
        $region19: #{maxpool2d_static_same_nchw.1} parent=15 // pred_region
          %p100 = scmp.lt.s32.totalorder %s17, 1
          %s101 = scalar_select %p100, %s17, 1
          %p102 = scmp.lt.s32.totalorder %s18, 0
          %s103 = scalar_select %p102, %s18, 0
          %s104 = smul.addr %s101, 30
          %s105 = sadd.s32 %s103, %s104
          %s106 = smul.addr %s105, 8
          %s107 = scalar_lea.vmem %s0, %s106
        $region20: #{maxpool2d_static_same_nchw.1} parent=15 // pred_fallthru
          _
      $region16: #{maxpool2d_static_same_nchw.1} parent=5 // pred_fallthru
        _
      %p108 = scmp.le.s32.totalorder 1, %s10
      %p109 = scmp.lt.s32.totalorder %s10, 3
      %p110 = pnand %p108, %p109
      %p111 = pneg %p110
      // Predicated region
      $region21: #{maxpool2d_static_same_nchw.1} parent=5 // pred_check
        _
      $region22: #{maxpool2d_static_same_nchw.1} parent=5 // pred_check_branch
        %113 = sbr.rel (%p110) target = $region24
      $region23: #{maxpool2d_static_same_nchw.1} parent=5 // pred_region
        %s114 = ssub.s32 %s10, 1
        %p115 = scmp.lt.s32.totalorder %s19, 1
        %s116 = scalar_select %p115, %s19, 1
        %p117 = scmp.lt.s32.totalorder %s20, 0
        %s118 = scalar_select %p117, %s20, 0
        %s119 = smul.addr %s116, 30
        %s120 = sadd.s32 %s118, %s119
        %s121 = smul.addr %s120, 8
        %s122 = scalar_lea.vmem %s0, %s121
        %p123 = pneg %p50
        %p124 = pneg %p47
        %p125 = pneg %p78
        %p126 = pneg %p75
        %s127 = sand.u32 %s65, 1
        %s128 = scalar_lea.sflag [#allocation5], %s127
        %s129 = sand.u32 %s65, 1
        %s130 = smul.addr %s129, 64
        %s131 = scalar_lea.vmem [#allocation4], %s130
        %p132 = scmp.lt.s32.totalorder %s19, 1
        %s133 = scalar_select %p132, %s19, 1
        %p134 = scmp.lt.s32.totalorder %s20, 0
        %s135 = scalar_select %p134, %s20, 0
        %s136 = smul.addr %s133, 30
        %s137 = sadd.s32 %s135, %s136
        %s138 = smul.addr %s137, 8
        %s139 = scalar_lea.vmem %s0, %s138
        %140 = vst [vmem:[#allocation2] sm:$0xff] 0.0
        %141 = vst [vmem:[#allocation2 + $0x8] sm:$0xff] 0.0
        %142 = vst [vmem:[#allocation2 + $0x10] sm:$0x1] 0.0
        %143 = vst [vmem:[#allocation2 + $0x18] sm:$0xff] 0.0
        %144 = vst [vmem:[#allocation2 + $0x20] sm:$0xff] 0.0
        %145 = vst [vmem:[#allocation2 + $0x28] sm:$0x1] 0.0
        %146 = vst [vmem:[#allocation2 + $0x30] sm:$0xff] 0.0
        %147 = vst [vmem:[#allocation2 + $0x38] sm:$0xff] 0.0
        %148 = vst [vmem:[#allocation2 + $0x40] sm:$0x1] 0.0
        %149 = vst [vmem:[#allocation2 + $0x48] sm:$0xff] 0.0
        %150 = vst [vmem:[#allocation2 + $0x50] sm:$0xff] 0.0
        %151 = vst [vmem:[#allocation2 + $0x58] sm:$0x1] 0.0
        %152 = vst [vmem:[#allocation2 + $0x60] sm:$0xff] 0.0
        %153 = vst [vmem:[#allocation2 + $0x68] sm:$0xff] 0.0
        %154 = vst [vmem:[#allocation2 + $0x70] sm:$0x1] 0.0
        %155 = vst [vmem:[#allocation2 + $0x78] sm:$0xff] 0.0
        %156 = vst [vmem:[#allocation2 + $0x80] sm:$0xff] 0.0
        %157 = vst [vmem:[#allocation2 + $0x88] sm:$0x1] 0.0
        %158 = vst [vmem:[#allocation2 + $0x90] sm:$0xff] 0.0
        %159 = vst [vmem:[#allocation2 + $0x98] sm:$0xff] 0.0
        %160 = vst [vmem:[#allocation2 + $0xa0] sm:$0x1] 0.0
        %161 = vst [vmem:[#allocation2 + $0xa8] sm:$0xff] 0.0
        %162 = vst [vmem:[#allocation2 + $0xb0] sm:$0xff] 0.0
        %163 = vst [vmem:[#allocation2 + $0xb8] sm:$0x1] 0.0
        %164 = vst [vmem:[#allocation2 + $0xc0] sm:$0xff] 0.0
        %165 = vst [vmem:[#allocation2 + $0xc8] sm:$0xff] 0.0
        %166 = vst [vmem:[#allocation2 + $0xd0] sm:$0x1] 0.0
        %167 = vst [vmem:[#allocation2 + $0xd8] sm:$0xff] 0.0
        %168 = vst [vmem:[#allocation2 + $0xe0] sm:$0xff] 0.0
        %169 = vst [vmem:[#allocation2 + $0xe8] sm:$0x1] 0.0
        %170 = vst [vmem:[#allocation2 + $0xf0] sm:$0xff] 0.0
        %171 = vst [vmem:[#allocation2 + $0xf8] sm:$0xff] 0.0
        %172 = vst [vmem:[#allocation2 + $0x100] sm:$0x1] 0.0
        %173 = vst [vmem:[#allocation2 + $0x108] sm:$0xff] 0.0
        %174 = vst [vmem:[#allocation2 + $0x110] sm:$0xff] 0.0
        %175 = vst [vmem:[#allocation2 + $0x118] sm:$0x1] 0.0
        %176 = vst [vmem:[#allocation2 + $0x120] sm:$0xff] 0.0
        %177 = vst [vmem:[#allocation2 + $0x128] sm:$0xff] 0.0
        %178 = vst [vmem:[#allocation2 + $0x130] sm:$0x1] 0.0
        %179 = vst [vmem:[#allocation2 + $0x138] sm:$0xff] 0.0
        %180 = vst [vmem:[#allocation2 + $0x140] sm:$0xff] 0.0
        %181 = vst [vmem:[#allocation2 + $0x148] sm:$0x1] 0.0
        %182 = vst [vmem:[#allocation2 + $0x150] sm:$0xff] 0.0
        %183 = vst [vmem:[#allocation2 + $0x158] sm:$0xff] 0.0
        %184 = vst [vmem:[#allocation2 + $0x160] sm:$0x1] 0.0
        %185 = vst [vmem:[#allocation2 + $0x168] sm:$0xff] 0.0
        %186 = vst [vmem:[#allocation2 + $0x170] sm:$0xff] 0.0
        %187 = vst [vmem:[#allocation2 + $0x178] sm:$0x1] 0.0
        %188 = vst [vmem:[#allocation2 + $0x180] sm:$0xff] 0.0
        %189 = vst [vmem:[#allocation2 + $0x188] sm:$0xff] 0.0
        %190 = vst [vmem:[#allocation2 + $0x190] sm:$0x1] 0.0
        %v191 = vld [vmem:[%s139] sm:$0xff]
        %v192 = vld [vmem:[%s139 + $0x8] sm:$0x7f]
        %v193 = vld [vmem:[%s139 + $0x10] sm:$0xff]
        %v194 = vld [vmem:[%s139 + $0x18] sm:$0x7f]
        %v195 = vld [vmem:[%s139 + $0x20] sm:$0xff]
        %v196 = vld [vmem:[%s139 + $0x28] sm:$0x7f]
        %v197 = vld [vmem:[%s139 + $0x30] sm:$0xff]
        %v198 = vld [vmem:[%s139 + $0x38] sm:$0x7f]
        %v199 = vld [vmem:[%s139 + $0x40] sm:$0xff]
        %v200 = vld [vmem:[%s139 + $0x48] sm:$0x7f]
        %v201 = vld [vmem:[%s139 + $0x50] sm:$0xff]
        %v202 = vld [vmem:[%s139 + $0x58] sm:$0x7f]
        %v203 = vld [vmem:[%s139 + $0x60] sm:$0xff]
        %v204 = vld [vmem:[%s139 + $0x68] sm:$0x7f]
        %v205 = vld [vmem:[%s139 + $0x70] sm:$0xff]
        %v206 = vld [vmem:[%s139 + $0x78] sm:$0x7f]
        %v207 = vld [vmem:[%s139 + $0x80] sm:$0xff]
        %v208 = vld [vmem:[%s139 + $0x88] sm:$0x7f]
        %v209 = vld [vmem:[%s139 + $0x90] sm:$0xff]
        %v210 = vld [vmem:[%s139 + $0x98] sm:$0x7f]
        %v211 = vld [vmem:[%s139 + $0xa0] sm:$0xff]
        %v212 = vld [vmem:[%s139 + $0xa8] sm:$0x7f]
        %v213 = vld [vmem:[%s139 + $0xb0] sm:$0xff]
        %v214 = vld [vmem:[%s139 + $0xb8] sm:$0x7f]
        %v215 = vld [vmem:[%s139 + $0xc0] sm:$0xff]
        %v216 = vld [vmem:[%s139 + $0xc8] sm:$0x7f]
        %v217 = vld [vmem:[%s139 + $0xd0] sm:$0xff]
        %v218 = vld [vmem:[%s139 + $0xd8] sm:$0x7f]
        %v219 = vld [vmem:[%s139 + $0xe0] sm:$0xff]
        %v220 = vld [vmem:[%s139 + $0xe8] sm:$0x7f]
        %s221 = scalar_lea.vmem [#allocation2], 24
        %222 = vst [vmem:[%s221 + $0x1] sm:$0xff] %v191
        %223 = vst [vmem:[%s221 + $0x9] sm:$0x7f] %v192
        %224 = vst [vmem:[%s221 + $0x19] sm:$0xff] %v193
        %225 = vst [vmem:[%s221 + $0x21] sm:$0x7f] %v194
        %226 = vst [vmem:[%s221 + $0x31] sm:$0xff] %v195
        %227 = vst [vmem:[%s221 + $0x39] sm:$0x7f] %v196
        %228 = vst [vmem:[%s221 + $0x49] sm:$0xff] %v197
        %229 = vst [vmem:[%s221 + $0x51] sm:$0x7f] %v198
        %230 = vst [vmem:[%s221 + $0x61] sm:$0xff] %v199
        %231 = vst [vmem:[%s221 + $0x69] sm:$0x7f] %v200
        %232 = vst [vmem:[%s221 + $0x79] sm:$0xff] %v201
        %233 = vst [vmem:[%s221 + $0x81] sm:$0x7f] %v202
        %234 = vst [vmem:[%s221 + $0x91] sm:$0xff] %v203
        %235 = vst [vmem:[%s221 + $0x99] sm:$0x7f] %v204
        %236 = vst [vmem:[%s221 + $0xa9] sm:$0xff] %v205
        %237 = vst [vmem:[%s221 + $0xb1] sm:$0x7f] %v206
        %238 = vst [vmem:[%s221 + $0xc1] sm:$0xff] %v207
        %239 = vst [vmem:[%s221 + $0xc9] sm:$0x7f] %v208
        %240 = vst [vmem:[%s221 + $0xd9] sm:$0xff] %v209
        %241 = vst [vmem:[%s221 + $0xe1] sm:$0x7f] %v210
        %242 = vst [vmem:[%s221 + $0xf1] sm:$0xff] %v211
        %243 = vst [vmem:[%s221 + $0xf9] sm:$0x7f] %v212
        %244 = vst [vmem:[%s221 + $0x109] sm:$0xff] %v213
        %245 = vst [vmem:[%s221 + $0x111] sm:$0x7f] %v214
        %246 = vst [vmem:[%s221 + $0x121] sm:$0xff] %v215
        %247 = vst [vmem:[%s221 + $0x129] sm:$0x7f] %v216
        %248 = vst [vmem:[%s221 + $0x139] sm:$0xff] %v217
        %249 = vst [vmem:[%s221 + $0x141] sm:$0x7f] %v218
        %250 = vst [vmem:[%s221 + $0x151] sm:$0xff] %v219
        %251 = vst [vmem:[%s221 + $0x159] sm:$0x7f] %v220
        %v252 = vld [vmem:[#allocation2] ss:$2 sm:$0xff]
        %s253 = scalar_lea.vmem [#allocation2], 24
        %v254 = vld [vmem:[%s253] ss:$2 sm:$0xff]
        %s255 = scalar_lea.vmem [#allocation2], 48
        %v256 = vld [vmem:[%s255] ss:$2 sm:$0xff]
        %s257 = scalar_lea.vmem [#allocation2], 72
        %v258 = vld [vmem:[%s257] ss:$2 sm:$0xff]
        %s259 = scalar_lea.vmem [#allocation2], 96
        %v260 = vld [vmem:[%s259] ss:$2 sm:$0xff]
        %s261 = scalar_lea.vmem [#allocation2], 120
        %v262 = vld [vmem:[%s261] ss:$2 sm:$0xff]
        %s263 = scalar_lea.vmem [#allocation2], 144
        %v264 = vld [vmem:[%s263] ss:$2 sm:$0xff]
        %s265 = scalar_lea.vmem [#allocation2], 168
        %v266 = vld [vmem:[%s265] ss:$2 sm:$0xff]
        %s267 = scalar_lea.vmem [#allocation2], 192
        %v268 = vld [vmem:[%s267] ss:$2 sm:$0xff]
        %s269 = scalar_lea.vmem [#allocation2], 216
        %v270 = vld [vmem:[%s269] ss:$2 sm:$0xff]
        %s271 = scalar_lea.vmem [#allocation2], 240
        %v272 = vld [vmem:[%s271] ss:$2 sm:$0xff]
        %s273 = scalar_lea.vmem [#allocation2], 264
        %v274 = vld [vmem:[%s273] ss:$2 sm:$0xff]
        %s275 = scalar_lea.vmem [#allocation2], 288
        %v276 = vld [vmem:[%s275] ss:$2 sm:$0xff]
        %s277 = scalar_lea.vmem [#allocation2], 312
        %v278 = vld [vmem:[%s277] ss:$2 sm:$0xff]
        %s279 = scalar_lea.vmem [#allocation2], 336
        %v280 = vld [vmem:[%s279] ss:$2 sm:$0xff]
        %s281 = scalar_lea.vmem [#allocation2], 360
        %v282 = vld [vmem:[%s281] ss:$2 sm:$0xff]
        %s283 = scalar_lea.vmem [#allocation2], 384
        %v284 = vld [vmem:[%s283] ss:$2 sm:$0xff]
        %s285 = scalar_lea.vmem [#allocation2], 1
        %v286 = vld [vmem:[%s285] ss:$2 sm:$0xff]
        %s287 = scalar_lea.vmem [#allocation2], 25
        %v288 = vld [vmem:[%s287] ss:$2 sm:$0xff]
        %s289 = scalar_lea.vmem [#allocation2], 49
        %v290 = vld [vmem:[%s289] ss:$2 sm:$0xff]
        %s291 = scalar_lea.vmem [#allocation2], 73
        %v292 = vld [vmem:[%s291] ss:$2 sm:$0xff]
        %s293 = scalar_lea.vmem [#allocation2], 97
        %v294 = vld [vmem:[%s293] ss:$2 sm:$0xff]
        %s295 = scalar_lea.vmem [#allocation2], 121
        %v296 = vld [vmem:[%s295] ss:$2 sm:$0xff]
        %s297 = scalar_lea.vmem [#allocation2], 145
        %v298 = vld [vmem:[%s297] ss:$2 sm:$0xff]
        %s299 = scalar_lea.vmem [#allocation2], 169
        %v300 = vld [vmem:[%s299] ss:$2 sm:$0xff]
        %s301 = scalar_lea.vmem [#allocation2], 193
        %v302 = vld [vmem:[%s301] ss:$2 sm:$0xff]
        %s303 = scalar_lea.vmem [#allocation2], 217
        %v304 = vld [vmem:[%s303] ss:$2 sm:$0xff]
        %s305 = scalar_lea.vmem [#allocation2], 241
        %v306 = vld [vmem:[%s305] ss:$2 sm:$0xff]
        %s307 = scalar_lea.vmem [#allocation2], 265
        %v308 = vld [vmem:[%s307] ss:$2 sm:$0xff]
        %s309 = scalar_lea.vmem [#allocation2], 289
        %v310 = vld [vmem:[%s309] ss:$2 sm:$0xff]
        %s311 = scalar_lea.vmem [#allocation2], 313
        %v312 = vld [vmem:[%s311] ss:$2 sm:$0xff]
        %s313 = scalar_lea.vmem [#allocation2], 337
        %v314 = vld [vmem:[%s313] ss:$2 sm:$0xff]
        %s315 = scalar_lea.vmem [#allocation2], 361
        %v316 = vld [vmem:[%s315] ss:$2 sm:$0xff]
        %s317 = scalar_lea.vmem [#allocation2], 385
        %v318 = vld [vmem:[%s317] ss:$2 sm:$0xff]
        %v319 = vmax.f32 %v252, %v286
        %v320 = vmax.f32 %v254, %v288
        %v321 = vmax.f32 %v256, %v290
        %v322 = vmax.f32 %v258, %v292
        %v323 = vmax.f32 %v260, %v294
        %v324 = vmax.f32 %v262, %v296
        %v325 = vmax.f32 %v264, %v298
        %v326 = vmax.f32 %v266, %v300
        %v327 = vmax.f32 %v268, %v302
        %v328 = vmax.f32 %v270, %v304
        %v329 = vmax.f32 %v272, %v306
        %v330 = vmax.f32 %v274, %v308
        %v331 = vmax.f32 %v276, %v310
        %v332 = vmax.f32 %v278, %v312
        %v333 = vmax.f32 %v280, %v314
        %v334 = vmax.f32 %v282, %v316
        %v335 = vmax.f32 %v284, %v318
        %s336 = scalar_lea.vmem [#allocation2], 2
        %v337 = vld [vmem:[%s336] ss:$2 sm:$0xff]
        %s338 = scalar_lea.vmem [#allocation2], 26
        %v339 = vld [vmem:[%s338] ss:$2 sm:$0xff]
        %s340 = scalar_lea.vmem [#allocation2], 50
        %v341 = vld [vmem:[%s340] ss:$2 sm:$0xff]
        %s342 = scalar_lea.vmem [#allocation2], 74
        %v343 = vld [vmem:[%s342] ss:$2 sm:$0xff]
        %s344 = scalar_lea.vmem [#allocation2], 98
        %v345 = vld [vmem:[%s344] ss:$2 sm:$0xff]
        %s346 = scalar_lea.vmem [#allocation2], 122
        %v347 = vld [vmem:[%s346] ss:$2 sm:$0xff]
        %s348 = scalar_lea.vmem [#allocation2], 146
        %v349 = vld [vmem:[%s348] ss:$2 sm:$0xff]
        %s350 = scalar_lea.vmem [#allocation2], 170
        %v351 = vld [vmem:[%s350] ss:$2 sm:$0xff]
        %s352 = scalar_lea.vmem [#allocation2], 194
        %v353 = vld [vmem:[%s352] ss:$2 sm:$0xff]
        %s354 = scalar_lea.vmem [#allocation2], 218
        %v355 = vld [vmem:[%s354] ss:$2 sm:$0xff]
        %s356 = scalar_lea.vmem [#allocation2], 242
        %v357 = vld [vmem:[%s356] ss:$2 sm:$0xff]
        %s358 = scalar_lea.vmem [#allocation2], 266
        %v359 = vld [vmem:[%s358] ss:$2 sm:$0xff]
        %s360 = scalar_lea.vmem [#allocation2], 290
        %v361 = vld [vmem:[%s360] ss:$2 sm:$0xff]
        %s362 = scalar_lea.vmem [#allocation2], 314
        %v363 = vld [vmem:[%s362] ss:$2 sm:$0xff]
        %s364 = scalar_lea.vmem [#allocation2], 338
        %v365 = vld [vmem:[%s364] ss:$2 sm:$0xff]
        %s366 = scalar_lea.vmem [#allocation2], 362
        %v367 = vld [vmem:[%s366] ss:$2 sm:$0xff]
        %s368 = scalar_lea.vmem [#allocation2], 386
        %v369 = vld [vmem:[%s368] ss:$2 sm:$0xff]
        %v370 = vmax.f32 %v319, %v337
        %v371 = vmax.f32 %v320, %v339
        %v372 = vmax.f32 %v321, %v341
        %v373 = vmax.f32 %v322, %v343
        %v374 = vmax.f32 %v323, %v345
        %v375 = vmax.f32 %v324, %v347
        %v376 = vmax.f32 %v325, %v349
        %v377 = vmax.f32 %v326, %v351
        %v378 = vmax.f32 %v327, %v353
        %v379 = vmax.f32 %v328, %v355
        %v380 = vmax.f32 %v329, %v357
        %v381 = vmax.f32 %v330, %v359
        %v382 = vmax.f32 %v331, %v361
        %v383 = vmax.f32 %v332, %v363
        %v384 = vmax.f32 %v333, %v365
        %v385 = vmax.f32 %v334, %v367
        %v386 = vmax.f32 %v335, %v369
        %387 = vst [vmem:[#allocation3] sm:$0xff] %v370
        %388 = vst [vmem:[#allocation3 + $0x8] sm:$0xff] %v371
        %389 = vst [vmem:[#allocation3 + $0x10] sm:$0xff] %v372
        %390 = vst [vmem:[#allocation3 + $0x18] sm:$0xff] %v373
        %391 = vst [vmem:[#allocation3 + $0x20] sm:$0xff] %v374
        %392 = vst [vmem:[#allocation3 + $0x28] sm:$0xff] %v375
        %393 = vst [vmem:[#allocation3 + $0x30] sm:$0xff] %v376
        %394 = vst [vmem:[#allocation3 + $0x38] sm:$0xff] %v377
        %395 = vst [vmem:[#allocation3 + $0x40] sm:$0xff] %v378
        %396 = vst [vmem:[#allocation3 + $0x48] sm:$0xff] %v379
        %397 = vst [vmem:[#allocation3 + $0x50] sm:$0xff] %v380
        %398 = vst [vmem:[#allocation3 + $0x58] sm:$0xff] %v381
        %399 = vst [vmem:[#allocation3 + $0x60] sm:$0xff] %v382
        %400 = vst [vmem:[#allocation3 + $0x68] sm:$0xff] %v383
        %401 = vst [vmem:[#allocation3 + $0x70] sm:$0xff] %v384
        %402 = vst [vmem:[#allocation3 + $0x78] sm:$0xff] %v385
        %403 = vst [vmem:[#allocation3 + $0x80] sm:$0xff] %v386
        %v404 = vld [vmem:[#allocation3] sm:$0xff]
        %v405 = vld [vmem:[#allocation3 + $0x10] sm:$0xff]
        %v406 = vld [vmem:[#allocation3 + $0x20] sm:$0xff]
        %v407 = vld [vmem:[#allocation3 + $0x30] sm:$0xff]
        %v408 = vld [vmem:[#allocation3 + $0x40] sm:$0xff]
        %v409 = vld [vmem:[#allocation3 + $0x50] sm:$0xff]
        %v410 = vld [vmem:[#allocation3 + $0x60] sm:$0xff]
        %v411 = vld [vmem:[#allocation3 + $0x70] sm:$0xff]
        %s412 = scalar_lea.vmem [#allocation3], 8
        %v413 = vld [vmem:[%s412] sm:$0xff]
        %v414 = vld [vmem:[%s412 + $0x10] sm:$0xff]
        %v415 = vld [vmem:[%s412 + $0x20] sm:$0xff]
        %v416 = vld [vmem:[%s412 + $0x30] sm:$0xff]
        %v417 = vld [vmem:[%s412 + $0x40] sm:$0xff]
        %v418 = vld [vmem:[%s412 + $0x50] sm:$0xff]
        %v419 = vld [vmem:[%s412 + $0x60] sm:$0xff]
        %v420 = vld [vmem:[%s412 + $0x70] sm:$0xff]
        %v421 = vmax.f32 %v404, %v413
        %v422 = vmax.f32 %v405, %v414
        %v423 = vmax.f32 %v406, %v415
        %v424 = vmax.f32 %v407, %v416
        %v425 = vmax.f32 %v408, %v417
        %v426 = vmax.f32 %v409, %v418
        %v427 = vmax.f32 %v410, %v419
        %v428 = vmax.f32 %v411, %v420
        %s429 = scalar_lea.vmem [#allocation3], 16
        %v430 = vld [vmem:[%s429] sm:$0xff]
        %v431 = vld [vmem:[%s429 + $0x10] sm:$0xff]
        %v432 = vld [vmem:[%s429 + $0x20] sm:$0xff]
        %v433 = vld [vmem:[%s429 + $0x30] sm:$0xff]
        %v434 = vld [vmem:[%s429 + $0x40] sm:$0xff]
        %v435 = vld [vmem:[%s429 + $0x50] sm:$0xff]
        %v436 = vld [vmem:[%s429 + $0x60] sm:$0xff]
        %v437 = vld [vmem:[%s429 + $0x70] sm:$0xff]
        %v438 = vmax.f32 %v421, %v430
        %v439 = vmax.f32 %v422, %v431
        %v440 = vmax.f32 %v423, %v432
        %v441 = vmax.f32 %v424, %v433
        %v442 = vmax.f32 %v425, %v434
        %v443 = vmax.f32 %v426, %v435
        %v444 = vmax.f32 %v427, %v436
        %v445 = vmax.f32 %v428, %v437
        %446 = vst [vmem:[%s131] sm:$0xff] %v438
        %447 = vst [vmem:[%s131 + $0x8] sm:$0xff] %v439
        %448 = vst [vmem:[%s131 + $0x10] sm:$0xff] %v440
        %449 = vst [vmem:[%s131 + $0x18] sm:$0xff] %v441
        %450 = vst [vmem:[%s131 + $0x20] sm:$0xff] %v442
        %451 = vst [vmem:[%s131 + $0x28] sm:$0xff] %v443
        %452 = vst [vmem:[%s131 + $0x30] sm:$0xff] %v444
        %453 = vst [vmem:[%s131 + $0x38] sm:$0xff] %v445
        %s454 = sand.u32 %s65, 1
        %s455 = scalar_lea.sflag [#allocation5], %s454
        %s456 = sand.u32 %s65, 1
        %s457 = smul.addr %s456, 64
        %s458 = scalar_lea.vmem [#allocation4], %s457
        // Predicated region
        $region25: #{maxpool2d_static_same_nchw.1} parent=23 // pred_check
          %p459 = pneg %p75
        $region26: #{maxpool2d_static_same_nchw.1} parent=23 // pred_check_branch
          %461 = sbr.rel (%p459) target = $region28
        $region27: #{maxpool2d_static_same_nchw.1} parent=23 // pred_region
          %463 = vsyncadd %s455, 0
          %s464 = smul.addr %s19, 8
          %s465 = sadd.s32 %s20, %s464
          %s466 = smul.addr %s465, 8
          %s467 = scalar_lea.hbm %s1, %s466
          %s468 = sshll.u32 %s458, 4
          %s469 = int_to_ptr.vmem [resolvable:$true] %s468
          %s470 = sshll.u32 %s467, 4
          %s471 = int_to_ptr.hbm [resolvable:$true] %s470
          %476 = dma.vmem_to_hbm [thread:$0]  %s469, 1024, %s471, %s455, 128, 128, 8
        $region28: #{maxpool2d_static_same_nchw.1} parent=23 // pred_fallthru
          _
      $region24: #{maxpool2d_static_same_nchw.1} parent=5 // pred_fallthru
        _
      %p477 = scmp.le.s32.totalorder 2, %s10
      // Predicated region
      $region29: #{maxpool2d_static_same_nchw.1} parent=5 // pred_check
        %p478 = pneg %p477
      $region30: #{maxpool2d_static_same_nchw.1} parent=5 // pred_check_branch
        %480 = sbr.rel (%p478) target = $region32
      $region31: #{maxpool2d_static_same_nchw.1} parent=5 // pred_region
        %s481 = ssub.s32 %s10, 2
        // Predicated region
        $region33: #{maxpool2d_static_same_nchw.1} parent=31 // pred_check
          %p482 = pneg %p81
        $region34: #{maxpool2d_static_same_nchw.1} parent=31 // pred_check_branch
          %484 = sbr.rel (%p482) target = $region36
        $region35: #{maxpool2d_static_same_nchw.1} parent=31 // pred_region
          %s485 = sand.u32 %s66, 1
          %s486 = scalar_lea.sflag [#allocation5], %s485
          %s487 = sand.u32 %s66, 1
          %s488 = smul.addr %s487, 64
          %s489 = scalar_lea.vmem [#allocation4], %s488
          %491 = dma.done %s486, 1024
        $region36: #{maxpool2d_static_same_nchw.1} parent=31 // pred_fallthru
          _
      $region32: #{maxpool2d_static_same_nchw.1} parent=5 // pred_fallthru
        _
    $region6: #{maxpool2d_static_same_nchw.1} parent=1 // loop_footer
      %s14 = sadd.s32 1, %s10
    $region7: #{maxpool2d_static_same_nchw.1} parent=1 // loop_footer_branch
      %9 = sbr.rel target = $region3
    $region8: #{maxpool2d_static_same_nchw.1} parent=1 // loop_exit
      _
    %492 = vsyncpa [#allocation5], 1
    %s493 = scalar_lea.sflag [#allocation5], 1
    %494 = vsyncpa %s493, 1

</llo_original>
